<compile_context>
chip_gen: v7x
topology: tpu7x:2x2x1
jax: 0.10.0
libtpu: 0.0.40
codegen_flags: <defaults>
</compile_context>

<pallas_src>
import jax
import jax.numpy as jnp
from jax.experimental import pallas as pl
from jax.experimental.pallas import tpu as pltpu


def _round_up(n, m):
    return ((n + m - 1) // m) * m


def munet_kernel(x_ref, w1_ref, w2_ref, b2_ref, w3_ref, b3_ref, o_ref):
    # x_ref : [8, TB]   feature-major input tile (rows 0-2 = x^T, row 3 = 1)
    # w1    : [128, 8]  fc1 weight in cols 0-2, fc1 bias in col 3, rest 0
    # w2    : [64, 128], b2 : [64, 1]
    # w3    : [64, 1],   b3 : [1, 1]
    # o_ref : [1, TB]   lane-dense output tile

    # ---- layer 1 (3 -> 128) + bias: single MXU matmul (bias via ones row) --
    h1 = jnp.dot(w1_ref[...], x_ref[...],
                 preferred_element_type=jnp.float32)            # [128, TB]
    h1 = jnp.maximum(h1, 0.0)                                   # ReLU

    # ---- layer 2 (128 -> 64): MXU ----
    h2 = jnp.dot(w2_ref[...], h1,
                 preferred_element_type=jnp.float32) + b2_ref[...]  # [64, TB]
    h2 = jnp.maximum(h2, 0.0)                                   # ReLU

    # ---- layer 3 (64 -> 1): VPU multiply + sublane (XLU) reduce ----
    mu = jnp.sum(w3_ref[...] * h2, axis=0, keepdims=True) + b3_ref[...]  # [1, TB]

    o_ref[...] = jnp.tanh(mu) * 2.0


def _choose_tiling(batch, tile_b):
    """Lane-granular (128) padding; tile re-derived so waste < 128 cols/tile.
    Forces >= 2 (even) grid steps once batch >= 256 so the "parallel" batch
    axis can shard across both TensorCores on v7x."""
    b128 = _round_up(batch, 128)
    tile = max(128, min(_round_up(tile_b, 128), b128))
    n = pl.cdiv(b128, tile)
    if b128 >= 256:
        n = max(2, n)
        n += n % 2                      # even step count balances v7x cores
    tile = _round_up(pl.cdiv(b128, n), 128)
    return n, tile, n * tile


def munet_forward(x, kparams, tile_b=8192):
    """x: [B, 3] float32 -> [B, 1] float32 (matches the PyTorch forward).

    kparams = (w1p, w2, b2, w3, b3) in kernel layout; see prepare_params().
    """
    w1p, w2, b2, w3, b3 = kparams
    B = x.shape[0]
    n_tiles, tile, B_pad = _choose_tiling(B, tile_b)

    # Feature-major, zero-padded input with the ones-row baked in: [8, B_pad].
    # TODO(synk): in a real pipeline, produce/store x in this layout upstream
    # so this transpose+pad (an extra HBM round trip) disappears entirely.
    xT = jnp.zeros((8, B_pad), jnp.float32)
    xT = xT.at[3, :].set(1.0)
    xT = xT.at[:3, :B].set(x.T.astype(jnp.float32))

    flops = 2 * B_pad * (128 * 8 + 64 * 128 + 64)
    bytes_accessed = 4 * (9 * B_pad + 128 * 8 + 64 * 128 + 64 + 64 + 1)

    out_t = pl.pallas_call(
        munet_kernel,
        out_shape=jax.ShapeDtypeStruct((1, B_pad), jnp.float32),
        grid=(n_tiles,),
        in_specs=[
            # batch-tiled input
            pl.BlockSpec((8, tile), lambda i: (0, i)),
            # weights/biases: constant block index -> DMA'd once, resident
            pl.BlockSpec((128, 8), lambda i: (0, 0)),
            pl.BlockSpec((64, 128), lambda i: (0, 0)),
            pl.BlockSpec((64, 1), lambda i: (0, 0)),
            pl.BlockSpec((64, 1), lambda i: (0, 0)),
            pl.BlockSpec((1, 1), lambda i: (0, 0)),
        ],
        out_specs=pl.BlockSpec((1, tile), lambda i: (0, i)),
        compiler_params=pltpu.CompilerParams(
            dimension_semantics=("parallel",),
            vmem_limit_bytes=32 * 1024 * 1024),
        cost_estimate=pl.CostEstimate(
            flops=flops, transcendentals=B_pad, bytes_accessed=bytes_accessed),
    )(xT, w1p, w2, b2, w3, b3)

    return out_t[0, :B].reshape(B, 1)


def init_params(key):
    """PyTorch nn.Linear default init: U(-1/sqrt(fan_in), 1/sqrt(fan_in)).
    Returned in PyTorch layout:
      w1 [128,3], b1 [128], w2 [64,128], b2 [64], w3 [1,64], b3 [1]."""
    def linear(key, fan_in, fan_out):
        kw, kb = jax.random.split(key)
        bound = 1.0 / (fan_in ** 0.5)
        w = jax.random.uniform(kw, (fan_out, fan_in), jnp.float32, -bound, bound)
        b = jax.random.uniform(kb, (fan_out,), jnp.float32, -bound, bound)
        return w, b

    k1, k2, k3 = jax.random.split(key, 3)
    w1, b1 = linear(k1, 3, 128)
    w2, b2 = linear(k2, 128, 64)
    w3, b3 = linear(k3, 64, 1)
    return w1, b1, w2, b2, w3, b3


def prepare_params(params):
    """Fold into kernel layout: fc1 bias becomes column 3 of a [128, 8]
    padded weight (matching the baked-in ones row of the padded input)."""
    w1, b1, w2, b2, w3, b3 = params
    w1p = jnp.zeros((128, 8), jnp.float32)
    w1p = w1p.at[:, :3].set(w1.astype(jnp.float32))
    w1p = w1p.at[:, 3].set(b1.astype(jnp.float32))
    return (w1p,
            w2.astype(jnp.float32),
            b2.reshape(64, 1).astype(jnp.float32),
            w3.reshape(64, 1).astype(jnp.float32),   # [1,64] -> [64,1]
            b3.reshape(1, 1).astype(jnp.float32))


def reference_forward(x, params):
    w1, b1, w2, b2, w3, b3 = params
    h1 = jnp.maximum(x @ w1.T + b1, 0.0)     # [B, 128]
    h2 = jnp.maximum(h1 @ w2.T + b2, 0.0)    # [B, 64]
    mu = h2 @ w3.T + b3                      # [B, 1]
    return jnp.tanh(mu) * 2.0


if __name__ == "__main__":
    key = jax.random.PRNGKey(0)
    kx, kx2, kx3, kp = jax.random.split(key, 4)
    params = init_params(kp)
    kparams = prepare_params(params)

    fwd = jax.jit(munet_forward, static_argnames=("tile_b",))

    # Small batch: single 128-lane tile.
    B = 8
    x = jax.random.normal(kx, (B, 3), jnp.float32)
    out = jax.block_until_ready(fwd(x, kparams))
    ref = reference_forward(x, params)
    assert out.shape == (B, 1)
    assert jnp.allclose(out, ref, atol=1e-5, rtol=1e-5)

    # Mid-size batch: multi-step grid with resident weights and the
    # lane-granular (non-tile-granular) padding path.
    B2 = 300
    x2 = jax.random.normal(kx2, (B2, 3), jnp.float32)
    out2 = jax.block_until_ready(fwd(x2, kparams, tile_b=256))
    ref2 = reference_forward(x2, params)
    assert out2.shape == (B2, 1)
    assert jnp.allclose(out2, ref2, atol=1e-5, rtol=1e-5)

    # Default config on a batch big enough to trigger the >=2-step split.
    B3 = 1000
    x3 = jax.random.normal(kx3, (B3, 3), jnp.float32)
    out3 = jax.block_until_ready(fwd(x3, kparams))
    ref3 = reference_forward(x3, params)
    assert out3.shape == (B3, 1)
    assert jnp.allclose(out3, ref3, atol=1e-5, rtol=1e-5)

    print("KERNEL_OK")
</pallas_src>

<mosaic_0001>
module attributes {stable_mosaic.version = 11 : i64} {
  func.func @munet_kernel(%arg0: i32, %arg1: memref<8x128xf32, #tpu.memory_space<vmem>>, %arg2: memref<128x8xf32, #tpu.memory_space<vmem>>, %arg3: memref<64x128xf32, #tpu.memory_space<vmem>>, %arg4: memref<64x1xf32, #tpu.memory_space<vmem>>, %arg5: memref<64x1xf32, #tpu.memory_space<vmem>>, %arg6: memref<1x1xf32, #tpu.memory_space<vmem>>, %arg7: memref<1x128xf32, #tpu.memory_space<vmem>>) attributes {dimension_semantics = [#tpu.dimension_semantics<parallel>], iteration_bounds = array<i64: 1>, scalar_prefetch = 0 : i64, scratch_operands = 0 : i64, tpu.core_type = #tpu.core_type<tc>, window_params = [{transform_indices = @transform_0, window_bounds = array<i64: 8, 128>}, {pipeline_mode = #tpu.pipeline_mode<synchronous>, transform_indices = @transform_1, window_bounds = array<i64: 128, 8>}, {pipeline_mode = #tpu.pipeline_mode<synchronous>, transform_indices = @transform_2, window_bounds = array<i64: 64, 128>}, {pipeline_mode = #tpu.pipeline_mode<synchronous>, transform_indices = @transform_3, window_bounds = array<i64: 64, 1>}, {pipeline_mode = #tpu.pipeline_mode<synchronous>, transform_indices = @transform_4, window_bounds = array<i64: 64, 1>}, {pipeline_mode = #tpu.pipeline_mode<synchronous>, transform_indices = @transform_5, window_bounds = array<i64: 1, 1>}, {transform_indices = @transform_6, window_bounds = array<i64: 1, 128>}]} {
    %c0 = arith.constant 0 : index
    %c0_0 = arith.constant 0 : index
    %0 = vector.load %arg2[%c0, %c0_0] : memref<128x8xf32, #tpu.memory_space<vmem>>, vector<128x8xf32>
    %c0_1 = arith.constant 0 : index
    %c0_2 = arith.constant 0 : index
    %1 = vector.load %arg1[%c0_1, %c0_2] : memref<8x128xf32, #tpu.memory_space<vmem>>, vector<8x128xf32>
    %cst = arith.constant dense<0.000000e+00> : vector<128x128xf32>
    %2 = tpu.matmul %0, %1, %cst {dimension_numbers = #tpu.dot_dimension_numbers<[1], [0], [0], [1], [0, 0, 1, 1], [], []>} : vector<128x8xf32>, vector<8x128xf32>, vector<128x128xf32> -> vector<128x128xf32>
    %cst_3 = arith.constant 0.000000e+00 : f32
    %3 = vector.broadcast %cst_3 : f32 to vector<128x128xf32>
    %4 = arith.maximumf %2, %3 : vector<128x128xf32>
    %c0_4 = arith.constant 0 : index
    %c0_5 = arith.constant 0 : index
    %5 = vector.load %arg3[%c0_4, %c0_5] : memref<64x128xf32, #tpu.memory_space<vmem>>, vector<64x128xf32>
    %cst_6 = arith.constant dense<0.000000e+00> : vector<64x128xf32>
    %6 = tpu.matmul %5, %4, %cst_6 {dimension_numbers = #tpu.dot_dimension_numbers<[1], [0], [0], [1], [0, 0, 1, 1], [], []>} : vector<64x128xf32>, vector<128x128xf32>, vector<64x128xf32> -> vector<64x128xf32>
    %c0_7 = arith.constant 0 : index
    %c0_8 = arith.constant 0 : index
    %7 = vector.load %arg4[%c0_7, %c0_8] : memref<64x1xf32, #tpu.memory_space<vmem>>, vector<64x1xf32>
    %8 = vector.broadcast %7 : vector<64x1xf32> to vector<64x128xf32>
    %9 = arith.addf %6, %8 : vector<64x128xf32>
    %cst_9 = arith.constant 0.000000e+00 : f32
    %10 = vector.broadcast %cst_9 : f32 to vector<64x128xf32>
    %11 = arith.maximumf %9, %10 : vector<64x128xf32>
    %c0_10 = arith.constant 0 : index
    %c0_11 = arith.constant 0 : index
    %12 = vector.load %arg5[%c0_10, %c0_11] : memref<64x1xf32, #tpu.memory_space<vmem>>, vector<64x1xf32>
    %13 = vector.broadcast %12 : vector<64x1xf32> to vector<64x128xf32>
    %14 = arith.mulf %13, %11 : vector<64x128xf32>
    %cst_12 = arith.constant dense<0.000000e+00> : vector<128xf32>
    %15 = vector.multi_reduction <add>, %14, %cst_12 [0] : vector<64x128xf32> to vector<128xf32>
    %16 = vector.shape_cast %15 : vector<128xf32> to vector<1x128xf32>
    %c0_13 = arith.constant 0 : index
    %c0_14 = arith.constant 0 : index
    %17 = vector.load %arg6[%c0_13, %c0_14] : memref<1x1xf32, #tpu.memory_space<vmem>>, vector<1x1xf32>
    %18 = vector.broadcast %17 : vector<1x1xf32> to vector<1x128xf32>
    %19 = arith.addf %16, %18 : vector<1x128xf32>
    %20 = math.tanh %19 : vector<1x128xf32>
    %cst_15 = arith.constant 2.000000e+00 : f32
    %21 = vector.broadcast %cst_15 : f32 to vector<1x128xf32>
    %22 = arith.mulf %20, %21 : vector<1x128xf32>
    %c0_16 = arith.constant 0 : index
    %c0_17 = arith.constant 0 : index
    %23 = vector.load %arg7[%c0_16, %c0_17] : memref<1x128xf32, #tpu.memory_space<vmem>>, vector<1x128xf32>
    tpu.vector_store %arg7[%c0_16, %c0_17], %22 {strides = array<i32>} : memref<1x128xf32, #tpu.memory_space<vmem>>, vector<1x128xf32>,
    return
  }
  func.func @transform_0(%arg0: i32) -> (i32, i32) {
    %c0_i32 = arith.constant 0 : i32
    %c0_i32_0 = arith.constant 0 : i32
    return %c0_i32, %arg0 : i32, i32
  }
  func.func @transform_1(%arg0: i32) -> (i32, i32) {
    %c0_i32 = arith.constant 0 : i32
    %c0_i32_0 = arith.constant 0 : i32
    %c0_i32_1 = arith.constant 0 : i32
    return %c0_i32, %c0_i32_0 : i32, i32
  }
  func.func @transform_2(%arg0: i32) -> (i32, i32) {
    %c0_i32 = arith.constant 0 : i32
    %c0_i32_0 = arith.constant 0 : i32
    %c0_i32_1 = arith.constant 0 : i32
    return %c0_i32, %c0_i32_0 : i32, i32
  }
  func.func @transform_3(%arg0: i32) -> (i32, i32) {
    %c0_i32 = arith.constant 0 : i32
    %c0_i32_0 = arith.constant 0 : i32
    %c0_i32_1 = arith.constant 0 : i32
    return %c0_i32, %c0_i32_0 : i32, i32
  }
  func.func @transform_4(%arg0: i32) -> (i32, i32) {
    %c0_i32 = arith.constant 0 : i32
    %c0_i32_0 = arith.constant 0 : i32
    %c0_i32_1 = arith.constant 0 : i32
    return %c0_i32, %c0_i32_0 : i32, i32
  }
  func.func @transform_5(%arg0: i32) -> (i32, i32) {
    %c0_i32 = arith.constant 0 : i32
    %c0_i32_0 = arith.constant 0 : i32
    %c0_i32_1 = arith.constant 0 : i32
    return %c0_i32, %c0_i32_0 : i32, i32
  }
  func.func @transform_6(%arg0: i32) -> (i32, i32) {
    %c0_i32 = arith.constant 0 : i32
    %c0_i32_0 = arith.constant 0 : i32
    return %c0_i32, %arg0 : i32, i32
  }
}

</mosaic_0001>

<llo_original>
// kernel: munet_forward.1
$region0: #{munet_forward.1}
  #allocation0 [shape = 'u32[]', space=smem, size = 0x4, offset = 0x4, fixed_abs, tag = 'smem constant byte address 0x4 - core index']
  #allocation1 [shape = 'u32[144,128]{1,0:T(1,128)}', space=vmem, size = 0x12000, scoped, tag = 'internal scratch']
  #allocation2 [shape = 'f32[1,1]{1,0:T(1,128)S(1)}', space=vmem, size = 0x200, scoped, tag = 'scoped memory for munet_forward.1']
  %s0 = inlined_call_operand.vmem [shape: f32[8,128], index: 0, kind: input, shape index: {}]
  %s1 = inlined_call_operand.vmem [shape: f32[128,8], index: 1, kind: input, shape index: {}]
  %s2 = inlined_call_operand.vmem [shape: f32[64,128], index: 2, kind: input, shape index: {}]
  %s3 = inlined_call_operand.vmem [shape: f32[64,1], index: 3, kind: input, shape index: {}]
  %s4 = inlined_call_operand.vmem [shape: f32[64,1], index: 4, kind: input, shape index: {}]
  %s5 = inlined_call_operand.<no memory space> [shape: f32[1,1], index: 5, kind: input, shape index: {}]
  %s6 = inlined_call_operand.vmem [shape: f32[1,128], index: 6, kind: output, shape index: {}]
  %s7 = sld [smem:[#allocation0]]
  $region34: #{munet_forward.1} parent=0
    _
  %s9 = ssub.s32 1, %s7
  %s10 = scalar_select 0, %s9, %s7
  %v11 = vstv %s5
  %12 = vst [vmem:[#allocation2] sm:$0x1] %v11
  // Predicated region
  $region2: #{munet_forward.1} parent=0 // pred_check
    _
  $region3: #{munet_forward.1} parent=0 // pred_check_branch
    %14 = sbr.rel (0) target = $region5
  $region4: #{munet_forward.1} parent=0 // pred_region
    _
  $region5: #{munet_forward.1} parent=0 // pred_fallthru
    _
  // Predicated region
  $region6: #{munet_forward.1} parent=0 // pred_check
    _
  $region7: #{munet_forward.1} parent=0 // pred_check_branch
    %16 = sbr.rel (0) target = $region9
  $region8: #{munet_forward.1} parent=0 // pred_region
    _
  $region9: #{munet_forward.1} parent=0 // pred_fallthru
    _
  // Predicated region
  $region10: #{munet_forward.1} parent=0 // pred_check
    _
  $region11: #{munet_forward.1} parent=0 // pred_check_branch
    %18 = sbr.rel (0) target = $region13
  $region12: #{munet_forward.1} parent=0 // pred_region
    _
  $region13: #{munet_forward.1} parent=0 // pred_fallthru
    _
  // Predicated region
  $region14: #{munet_forward.1} parent=0 // pred_check
    _
  $region15: #{munet_forward.1} parent=0 // pred_check_branch
    %20 = sbr.rel (0) target = $region17
  $region16: #{munet_forward.1} parent=0 // pred_region
    _
  $region17: #{munet_forward.1} parent=0 // pred_fallthru
    _
  // Predicated region
  $region18: #{munet_forward.1} parent=0 // pred_check
    _
  $region19: #{munet_forward.1} parent=0 // pred_check_branch
    %22 = sbr.rel (0) target = $region21
  $region20: #{munet_forward.1} parent=0 // pred_region
    _
  $region21: #{munet_forward.1} parent=0 // pred_fallthru
    _
  // Predicated region
  $region22: #{munet_forward.1} parent=0 // pred_check
    _
  $region23: #{munet_forward.1} parent=0 // pred_check_branch
    %24 = sbr.rel (0) target = $region25
  $region24: #{munet_forward.1} parent=0 // pred_region
    _
  $region25: #{munet_forward.1} parent=0 // pred_fallthru
    _
  %v25 = vld [vmem:[%s1] sm:$0xff]
  %v26 = vld [vmem:[%s1 + $0x8] sm:$0xff]
  %v27 = vld [vmem:[%s1 + $0x10] sm:$0xff]
  %v28 = vld [vmem:[%s1 + $0x18] sm:$0xff]
  %v29 = vld [vmem:[%s1 + $0x20] sm:$0xff]
  %v30 = vld [vmem:[%s1 + $0x28] sm:$0xff]
  %v31 = vld [vmem:[%s1 + $0x30] sm:$0xff]
  %v32 = vld [vmem:[%s1 + $0x38] sm:$0xff]
  %v33 = vld [vmem:[%s1 + $0x40] sm:$0xff]
  %v34 = vld [vmem:[%s1 + $0x48] sm:$0xff]
  %v35 = vld [vmem:[%s1 + $0x50] sm:$0xff]
  %v36 = vld [vmem:[%s1 + $0x58] sm:$0xff]
  %v37 = vld [vmem:[%s1 + $0x60] sm:$0xff]
  %v38 = vld [vmem:[%s1 + $0x68] sm:$0xff]
  %v39 = vld [vmem:[%s1 + $0x70] sm:$0xff]
  %v40 = vld [vmem:[%s1 + $0x78] sm:$0xff]
  %v41 = vld [vmem:[%s0] sm:$0xff]
  %vm42 = vcmask 64512
  %v44 = vsel %vm42, %v25, 0
  %v47 = vsel %vm42, %v26, 0
  %v50 = vsel %vm42, %v27, 0
  %v53 = vsel %vm42, %v28, 0
  %v56 = vsel %vm42, %v29, 0
  %v59 = vsel %vm42, %v30, 0
  %v62 = vsel %vm42, %v31, 0
  %v65 = vsel %vm42, %v32, 0
  %v68 = vsel %vm42, %v33, 0
  %v71 = vsel %vm42, %v34, 0
  %v74 = vsel %vm42, %v35, 0
  %v77 = vsel %vm42, %v36, 0
  %v80 = vsel %vm42, %v37, 0
  %v83 = vsel %vm42, %v38, 0
  %v86 = vsel %vm42, %v39, 0
  %v89 = vsel %vm42, %v40, 0
  %91 = vmatprep.subr.mxu0 0.0
  %92 = vmatpush1.msra.mxu0 %v41
  %93 = vmatprep.subr.mxu0 0.0
  %94 = vmatpush1.msra.mxu0 0.0
  %95 = vmatprep.subr.mxu0 0.0
  %96 = vmatpush1.msra.mxu0 0.0
  %97 = vmatprep.subr.mxu0 0.0
  %98 = vmatpush1.msra.mxu0 0.0
  %99 = vmatprep.subr.mxu0 0.0
  %100 = vmatpush1.msra.mxu0 0.0
  %101 = vmatprep.subr.mxu0 0.0
  %102 = vmatpush1.msra.mxu0 0.0
  %103 = vmatprep.subr.mxu0 0.0
  %104 = vmatpush1.msra.mxu0 0.0
  %105 = vmatprep.subr.mxu0 0.0
  %106 = vmatpush1.msra.mxu0 0.0
  %107 = vmatprep.subr.mxu0 0.0
  %108 = vmatpush1.msra.mxu0 0.0
  %109 = vmatprep.subr.mxu0 0.0
  %110 = vmatpush1.msra.mxu0 0.0
  %111 = vmatprep.subr.mxu0 0.0
  %112 = vmatpush1.msra.mxu0 0.0
  %113 = vmatprep.subr.mxu0 0.0
  %114 = vmatpush1.msra.mxu0 0.0
  %115 = vmatprep.subr.mxu0 0.0
  %116 = vmatpush1.msra.mxu0 0.0
  %117 = vmatprep.subr.mxu0 0.0
  %118 = vmatpush1.msra.mxu0 0.0
  %119 = vmatprep.subr.mxu0 0.0
  %120 = vmatpush1.msra.mxu0 0.0
  %121 = vmatprep.subr.mxu0 0.0
  %122 = vmatpush1.msra.mxu0 0.0
  %123 = vmatprep.subr.mxu0 0.0
  %124 = vmatpush1.msra.mxu0 0.0
  %125 = vmatprep.subr.mxu0 0.0
  %126 = vmatpush1.msra.mxu0 0.0
  %127 = vmatprep.subr.mxu0 0.0
  %128 = vmatpush1.msra.mxu0 0.0
  %129 = vmatprep.subr.mxu0 0.0
  %130 = vmatpush1.msra.mxu0 0.0
  %131 = vmatprep.subr.mxu0 0.0
  %132 = vmatpush1.msra.mxu0 0.0
  %133 = vmatprep.subr.mxu0 0.0
  %134 = vmatpush1.msra.mxu0 0.0
  %135 = vmatprep.subr.mxu0 0.0
  %136 = vmatpush1.msra.mxu0 0.0
  %137 = vmatprep.subr.mxu0 0.0
  %138 = vmatpush1.msra.mxu0 0.0
  %139 = vmatprep.subr.mxu0 0.0
  %140 = vmatpush1.msra.mxu0 0.0
  %141 = vmatprep.subr.mxu0 0.0
  %142 = vmatpush1.msra.mxu0 0.0
  %143 = vmatprep.subr.mxu0 0.0
  %144 = vmatpush1.msra.mxu0 0.0
  %145 = vmatprep.subr.mxu0 0.0
  %146 = vmatpush1.msra.mxu0 0.0
  %147 = vmatprep.subr.mxu0 0.0
  %148 = vmatpush1.msra.mxu0 0.0
  %149 = vmatprep.subr.mxu0 0.0
  %150 = vmatpush1.msra.mxu0 0.0
  %151 = vmatprep.subr.mxu0 0.0
  %152 = vmatpush1.msra.mxu0 0.0
  %153 = vmatprep.subr.mxu0 0.0
  %154 = vmatpush1.msra.mxu0 0.0
  %155 = vmatprep.mubr.f32.mxu0 0.0
  %156 = vmatmul.mubr.f32.gmra.mrb[0].mxu0 %v44
  %v157 = vpop.f32.mrb[0].mxu0
  %v158 = vadd.f32 0.0, %v157
  %v159 = vpop.f32.mrb[0].mxu0
  %160 = vmatprep.mubr.f32.mxu0 0.0
  %161 = vmatmul.mubr.f32.gmra.mrb[0].mxu0 %v47
  %v162 = vpop.f32.mrb[0].mxu0
  %v163 = vadd.f32 0.0, %v162
  %v164 = vpop.f32.mrb[0].mxu0
  %165 = vmatprep.mubr.f32.mxu0 0.0
  %166 = vmatmul.mubr.f32.gmra.mrb[0].mxu0 %v50
  %v167 = vpop.f32.mrb[0].mxu0
  %v168 = vadd.f32 0.0, %v167
  %v169 = vpop.f32.mrb[0].mxu0
  %170 = vmatprep.mubr.f32.mxu0 0.0
  %171 = vmatmul.mubr.f32.gmra.mrb[0].mxu0 %v53
  %v172 = vpop.f32.mrb[0].mxu0
  %v173 = vadd.f32 0.0, %v172
  %v174 = vpop.f32.mrb[0].mxu0
  %175 = vmatprep.mubr.f32.mxu0 0.0
  %176 = vmatmul.mubr.f32.gmra.mrb[0].mxu0 %v56
  %v177 = vpop.f32.mrb[0].mxu0
  %v178 = vadd.f32 0.0, %v177
  %v179 = vpop.f32.mrb[0].mxu0
  %180 = vmatprep.mubr.f32.mxu0 0.0
  %181 = vmatmul.mubr.f32.gmra.mrb[0].mxu0 %v59
  %v182 = vpop.f32.mrb[0].mxu0
  %v183 = vadd.f32 0.0, %v182
  %v184 = vpop.f32.mrb[0].mxu0
  %185 = vmatprep.mubr.f32.mxu0 0.0
  %186 = vmatmul.mubr.f32.gmra.mrb[0].mxu0 %v62
  %v187 = vpop.f32.mrb[0].mxu0
  %v188 = vadd.f32 0.0, %v187
  %v189 = vpop.f32.mrb[0].mxu0
  %190 = vmatprep.mubr.f32.mxu0 0.0
  %191 = vmatmul.mubr.f32.gmra.mrb[0].mxu0 %v65
  %v192 = vpop.f32.mrb[0].mxu0
  %v193 = vadd.f32 0.0, %v192
  %v194 = vpop.f32.mrb[0].mxu0
  %195 = vmatprep.mubr.f32.mxu0 0.0
  %196 = vmatmul.mubr.f32.gmra.mrb[0].mxu0 %v68
  %v197 = vpop.f32.mrb[0].mxu0
  %v198 = vadd.f32 0.0, %v197
  %v199 = vpop.f32.mrb[0].mxu0
  %200 = vmatprep.mubr.f32.mxu0 0.0
  %201 = vmatmul.mubr.f32.gmra.mrb[0].mxu0 %v71
  %v202 = vpop.f32.mrb[0].mxu0
  %v203 = vadd.f32 0.0, %v202
  %v204 = vpop.f32.mrb[0].mxu0
  %205 = vmatprep.mubr.f32.mxu0 0.0
  %206 = vmatmul.mubr.f32.gmra.mrb[0].mxu0 %v74
  %v207 = vpop.f32.mrb[0].mxu0
  %v208 = vadd.f32 0.0, %v207
  %v209 = vpop.f32.mrb[0].mxu0
  %210 = vmatprep.mubr.f32.mxu0 0.0
  %211 = vmatmul.mubr.f32.gmra.mrb[0].mxu0 %v77
  %v212 = vpop.f32.mrb[0].mxu0
  %v213 = vadd.f32 0.0, %v212
  %v214 = vpop.f32.mrb[0].mxu0
  %215 = vmatprep.mubr.f32.mxu0 0.0
  %216 = vmatmul.mubr.f32.gmra.mrb[0].mxu0 %v80
  %v217 = vpop.f32.mrb[0].mxu0
  %v218 = vadd.f32 0.0, %v217
  %v219 = vpop.f32.mrb[0].mxu0
  %220 = vmatprep.mubr.f32.mxu0 0.0
  %221 = vmatmul.mubr.f32.gmra.mrb[0].mxu0 %v83
  %v222 = vpop.f32.mrb[0].mxu0
  %v223 = vadd.f32 0.0, %v222
  %v224 = vpop.f32.mrb[0].mxu0
  %225 = vmatprep.mubr.f32.mxu0 0.0
  %226 = vmatmul.mubr.f32.gmra.mrb[0].mxu0 %v86
  %v227 = vpop.f32.mrb[0].mxu0
  %v228 = vadd.f32 0.0, %v227
  %v229 = vpop.f32.mrb[0].mxu0
  %230 = vmatprep.mubr.f32.mxu0 0.0
  %231 = vmatmul.mubr.f32.gmra.mrb[0].mxu0 %v89
  %v232 = vpop.f32.mrb[0].mxu0
  %v233 = vadd.f32 0.0, %v232
  %v234 = vpop.f32.mrb[0].mxu0
  %235 = vdwg.mxu0
  %v236 = vmax.f32 %v158, 0.0
  %v237 = vmax.f32 %v163, 0.0
  %v238 = vmax.f32 %v168, 0.0
  %v239 = vmax.f32 %v173, 0.0
  %v240 = vmax.f32 %v178, 0.0
  %v241 = vmax.f32 %v183, 0.0
  %v242 = vmax.f32 %v188, 0.0
  %v243 = vmax.f32 %v193, 0.0
  %v244 = vmax.f32 %v198, 0.0
  %v245 = vmax.f32 %v203, 0.0
  %v246 = vmax.f32 %v208, 0.0
  %v247 = vmax.f32 %v213, 0.0
  %v248 = vmax.f32 %v218, 0.0
  %v249 = vmax.f32 %v223, 0.0
  %v250 = vmax.f32 %v228, 0.0
  %v251 = vmax.f32 %v233, 0.0
  %v252 = vld [vmem:[%s2] sm:$0xff]
  %v253 = vld [vmem:[%s2 + $0x8] sm:$0xff]
  %v254 = vld [vmem:[%s2 + $0x10] sm:$0xff]
  %v255 = vld [vmem:[%s2 + $0x18] sm:$0xff]
  %v256 = vld [vmem:[%s2 + $0x20] sm:$0xff]
  %v257 = vld [vmem:[%s2 + $0x28] sm:$0xff]
  %v258 = vld [vmem:[%s2 + $0x30] sm:$0xff]
  %v259 = vld [vmem:[%s2 + $0x38] sm:$0xff]
  %v260 = vld [vmem:[%s3] sm:$0xff]
  %v261 = vld [vmem:[%s3 + $0x8] sm:$0xff]
  %v262 = vld [vmem:[%s3 + $0x10] sm:$0xff]
  %v263 = vld [vmem:[%s3 + $0x18] sm:$0xff]
  %v264 = vld [vmem:[%s3 + $0x20] sm:$0xff]
  %v265 = vld [vmem:[%s3 + $0x28] sm:$0xff]
  %v266 = vld [vmem:[%s3 + $0x30] sm:$0xff]
  %v267 = vld [vmem:[%s3 + $0x38] sm:$0xff]
  %269 = vset.pattern.permute.xlu0 0
  %270 = vperm.xlu0 %269, %v260
  %v271 = vpop.permute.xlu0 %270
  %274 = vset.pattern.permute.xlu0 0
  %275 = vperm.xlu0 %274, %v261
  %v276 = vpop.permute.xlu0 %275
  %279 = vset.pattern.permute.xlu0 0
  %280 = vperm.xlu0 %279, %v262
  %v281 = vpop.permute.xlu0 %280
  %284 = vset.pattern.permute.xlu0 0
  %285 = vperm.xlu0 %284, %v263
  %v286 = vpop.permute.xlu0 %285
  %289 = vset.pattern.permute.xlu0 0
  %290 = vperm.xlu0 %289, %v264
  %v291 = vpop.permute.xlu0 %290
  %294 = vset.pattern.permute.xlu0 0
  %295 = vperm.xlu0 %294, %v265
  %v296 = vpop.permute.xlu0 %295
  %299 = vset.pattern.permute.xlu0 0
  %300 = vperm.xlu0 %299, %v266
  %v301 = vpop.permute.xlu0 %300
  %304 = vset.pattern.permute.xlu0 0
  %305 = vperm.xlu0 %304, %v267
  %v306 = vpop.permute.xlu0 %305
  %308 = vmatprep.subr.mxu0 0.0
  %309 = vmatpush1.msra.mxu0 %v236
  %310 = vmatprep.subr.mxu0 0.0
  %311 = vmatpush1.msra.mxu0 %v237
  %312 = vmatprep.subr.mxu0 0.0
  %313 = vmatpush1.msra.mxu0 %v238
  %314 = vmatprep.subr.mxu0 0.0
  %315 = vmatpush1.msra.mxu0 %v239
  %316 = vmatprep.subr.mxu0 0.0
  %317 = vmatpush1.msra.mxu0 %v240
  %318 = vmatprep.subr.mxu0 0.0
  %319 = vmatpush1.msra.mxu0 %v241
  %320 = vmatprep.subr.mxu0 0.0
  %321 = vmatpush1.msra.mxu0 %v242
  %322 = vmatprep.subr.mxu0 0.0
  %323 = vmatpush1.msra.mxu0 %v243
  %324 = vmatprep.subr.mxu0 0.0
  %325 = vmatpush1.msra.mxu0 %v244
  %326 = vmatprep.subr.mxu0 0.0
  %327 = vmatpush1.msra.mxu0 %v245
  %328 = vmatprep.subr.mxu0 0.0
  %329 = vmatpush1.msra.mxu0 %v246
  %330 = vmatprep.subr.mxu0 0.0
  %331 = vmatpush1.msra.mxu0 %v247
  %332 = vmatprep.subr.mxu0 0.0
  %333 = vmatpush1.msra.mxu0 %v248
  %334 = vmatprep.subr.mxu0 0.0
  %335 = vmatpush1.msra.mxu0 %v249
  %336 = vmatprep.subr.mxu0 0.0
  %337 = vmatpush1.msra.mxu0 %v250
  %338 = vmatprep.subr.mxu0 0.0
  %339 = vmatpush1.msra.mxu0 %v251
  %340 = vmatprep.subr.mxu0 0.0
  %341 = vmatpush1.msra.mxu0 0.0
  %342 = vmatprep.subr.mxu0 0.0
  %343 = vmatpush1.msra.mxu0 0.0
  %344 = vmatprep.subr.mxu0 0.0
  %345 = vmatpush1.msra.mxu0 0.0
  %346 = vmatprep.subr.mxu0 0.0
  %347 = vmatpush1.msra.mxu0 0.0
  %348 = vmatprep.subr.mxu0 0.0
  %349 = vmatpush1.msra.mxu0 0.0
  %350 = vmatprep.subr.mxu0 0.0
  %351 = vmatpush1.msra.mxu0 0.0
  %352 = vmatprep.subr.mxu0 0.0
  %353 = vmatpush1.msra.mxu0 0.0
  %354 = vmatprep.subr.mxu0 0.0
  %355 = vmatpush1.msra.mxu0 0.0
  %356 = vmatprep.subr.mxu0 0.0
  %357 = vmatpush1.msra.mxu0 0.0
  %358 = vmatprep.subr.mxu0 0.0
  %359 = vmatpush1.msra.mxu0 0.0
  %360 = vmatprep.subr.mxu0 0.0
  %361 = vmatpush1.msra.mxu0 0.0
  %362 = vmatprep.subr.mxu0 0.0
  %363 = vmatpush1.msra.mxu0 0.0
  %364 = vmatprep.subr.mxu0 0.0
  %365 = vmatpush1.msra.mxu0 0.0
  %366 = vmatprep.subr.mxu0 0.0
  %367 = vmatpush1.msra.mxu0 0.0
  %368 = vmatprep.subr.mxu0 0.0
  %369 = vmatpush1.msra.mxu0 0.0
  %370 = vmatprep.subr.mxu0 0.0
  %371 = vmatpush1.msra.mxu0 0.0
  %372 = vmatprep.mubr.f32.mxu0 0.0
  %373 = vmatmul.mubr.f32.gmra.mrb[0].mxu0 %v252
  %v374 = vpop.f32.mrb[0].mxu0
  %v375 = vadd.f32 %v271, %v374
  %v376 = vpop.f32.mrb[0].mxu0
  %377 = vmatprep.mubr.f32.mxu0 0.0
  %378 = vmatmul.mubr.f32.gmra.mrb[0].mxu0 %v253
  %v379 = vpop.f32.mrb[0].mxu0
  %v380 = vadd.f32 %v276, %v379
  %v381 = vpop.f32.mrb[0].mxu0
  %382 = vmatprep.mubr.f32.mxu0 0.0
  %383 = vmatmul.mubr.f32.gmra.mrb[0].mxu0 %v254
  %v384 = vpop.f32.mrb[0].mxu0
  %v385 = vadd.f32 %v281, %v384
  %v386 = vpop.f32.mrb[0].mxu0
  %387 = vmatprep.mubr.f32.mxu0 0.0
  %388 = vmatmul.mubr.f32.gmra.mrb[0].mxu0 %v255
  %v389 = vpop.f32.mrb[0].mxu0
  %v390 = vadd.f32 %v286, %v389
  %v391 = vpop.f32.mrb[0].mxu0
  %392 = vmatprep.mubr.f32.mxu0 0.0
  %393 = vmatmul.mubr.f32.gmra.mrb[0].mxu0 %v256
  %v394 = vpop.f32.mrb[0].mxu0
  %v395 = vadd.f32 %v291, %v394
  %v396 = vpop.f32.mrb[0].mxu0
  %397 = vmatprep.mubr.f32.mxu0 0.0
  %398 = vmatmul.mubr.f32.gmra.mrb[0].mxu0 %v257
  %v399 = vpop.f32.mrb[0].mxu0
  %v400 = vadd.f32 %v296, %v399
  %v401 = vpop.f32.mrb[0].mxu0
  %402 = vmatprep.mubr.f32.mxu0 0.0
  %403 = vmatmul.mubr.f32.gmra.mrb[0].mxu0 %v258
  %v404 = vpop.f32.mrb[0].mxu0
  %v405 = vadd.f32 %v301, %v404
  %v406 = vpop.f32.mrb[0].mxu0
  %407 = vmatprep.mubr.f32.mxu0 0.0
  %408 = vmatmul.mubr.f32.gmra.mrb[0].mxu0 %v259
  %v409 = vpop.f32.mrb[0].mxu0
  %v410 = vadd.f32 %v306, %v409
  %v411 = vpop.f32.mrb[0].mxu0
  %412 = vdwg.mxu0
  %v413 = vmax.f32 %v375, 0.0
  %v414 = vmax.f32 %v380, 0.0
  %v415 = vmax.f32 %v385, 0.0
  %v416 = vmax.f32 %v390, 0.0
  %v417 = vmax.f32 %v395, 0.0
  %v418 = vmax.f32 %v400, 0.0
  %v419 = vmax.f32 %v405, 0.0
  %v420 = vmax.f32 %v410, 0.0
  %v421 = vld [vmem:[%s4] sm:$0xff]
  %v422 = vld [vmem:[%s4 + $0x8] sm:$0xff]
  %v423 = vld [vmem:[%s4 + $0x10] sm:$0xff]
  %v424 = vld [vmem:[%s4 + $0x18] sm:$0xff]
  %v425 = vld [vmem:[%s4 + $0x20] sm:$0xff]
  %v426 = vld [vmem:[%s4 + $0x28] sm:$0xff]
  %v427 = vld [vmem:[%s4 + $0x30] sm:$0xff]
  %v428 = vld [vmem:[%s4 + $0x38] sm:$0xff]
  %430 = vset.pattern.permute.xlu0 0
  %431 = vperm.xlu0 %430, %v421
  %v432 = vpop.permute.xlu0 %431
  %435 = vset.pattern.permute.xlu0 0
  %436 = vperm.xlu0 %435, %v422
  %v437 = vpop.permute.xlu0 %436
  %440 = vset.pattern.permute.xlu0 0
  %441 = vperm.xlu0 %440, %v423
  %v442 = vpop.permute.xlu0 %441
  %445 = vset.pattern.permute.xlu0 0
  %446 = vperm.xlu0 %445, %v424
  %v447 = vpop.permute.xlu0 %446
  %450 = vset.pattern.permute.xlu0 0
  %451 = vperm.xlu0 %450, %v425
  %v452 = vpop.permute.xlu0 %451
  %455 = vset.pattern.permute.xlu0 0
  %456 = vperm.xlu0 %455, %v426
  %v457 = vpop.permute.xlu0 %456
  %460 = vset.pattern.permute.xlu0 0
  %461 = vperm.xlu0 %460, %v427
  %v462 = vpop.permute.xlu0 %461
  %465 = vset.pattern.permute.xlu0 0
  %466 = vperm.xlu0 %465, %v428
  %v467 = vpop.permute.xlu0 %466
  %v469 = vmul.f32 %v432, %v413
  %v470 = vmul.f32 %v437, %v414
  %v471 = vmul.f32 %v442, %v415
  %v472 = vmul.f32 %v447, %v416
  %v473 = vmul.f32 %v452, %v417
  %v474 = vmul.f32 %v457, %v418
  %v475 = vmul.f32 %v462, %v419
  %v476 = vmul.f32 %v467, %v420
  %v477 = vadd.f32 %v469, %v470
  %v478 = vadd.f32 %v477, %v471
  %v479 = vadd.f32 %v478, %v472
  %v480 = vadd.f32 %v479, %v473
  %v481 = vadd.f32 %v480, %v474
  %v482 = vadd.f32 %v481, %v475
  %v483 = vadd.f32 %v482, %v476
  %v484 = vrot.slane %v483, 4
  %v485 = vadd.f32 %v483, %v484
  %v486 = vrot.slane %v485, 2
  %v487 = vadd.f32 %v485, %v486
  %v488 = vrot.slane %v487, 1
  %v489 = vadd.f32 %v487, %v488
  %v490 = vld [vmem:[#allocation2] sm:$0x1]
  %492 = vset.pattern.permute.xlu0 0
  %493 = vperm.xlu0 %492, %v490
  %v494 = vpop.permute.xlu0 %493
  %v496 = vlaneseq
  %v497 = vshrl.u32 %v496, 7
  %v498 = vsub.s32 0, %v497
  %v499 = vrot.slane %v494, %v498
  %v500 = vadd.f32 %v489, %v499
  %v501 = vtanh.pop %v500
  %v502 = vmul.f32 %v501, 2.0
  %503 = vst [vmem:[%s6] sm:$0x1] %v502
  // Predicated region
  $region26: #{munet_forward.1} parent=0 // pred_check
    _
  $region27: #{munet_forward.1} parent=0 // pred_check_branch
    %505 = sbr.rel (0) target = $region29
  $region28: #{munet_forward.1} parent=0 // pred_region
    _
  $region29: #{munet_forward.1} parent=0 // pred_fallthru
    _
  // Predicated region
  $region30: #{munet_forward.1} parent=0 // pred_check
    _
  $region31: #{munet_forward.1} parent=0 // pred_check_branch
    %507 = sbr.rel (0) target = $region33
  $region32: #{munet_forward.1} parent=0 // pred_region
    _
  $region33: #{munet_forward.1} parent=0 // pred_fallthru
    _

</llo_original>
